<compile_context>
chip_gen: v5e
topology: v5e:2x2
jax: 0.10.0
libtpu: 0.0.40
codegen_flags: <defaults>
</compile_context>

<pallas_src>
import functools

import jax
import jax.numpy as jnp
from jax.experimental import pallas as pl
from jax.experimental.pallas import tpu as pltpu


def _pick_row_tile(hw, max_tile=512):
    """Largest power-of-two row tile <= max_tile that divides hw (>= 8)."""
    tm = max_tile
    while tm >= 8:
        if hw % tm == 0:
            return tm
        tm //= 2
    return hw  # fallback: full extent (legal even if not a multiple of 8)


# ----------------------------------------------------------------------------
# Pallas kernel: one (camera, row-tile) step of the fused pixel MLP
#   out[b, rows] = relu(coords[rows] @ w1c + (camera[b] @ w1k + b1)) @ w2 + b2
# ----------------------------------------------------------------------------
def _raster_tile_kernel(coords_ref, camb1_ref, w1c_ref, w2_ref, b2_ref, out_ref):
    # coords_ref: (TM, 2)      f32  pixel-center coords tile (camera independent)
    # camb1_ref:  (1, 1, HID)  f32  camera @ w1_cam + b1 for this camera
    # w1c_ref:    (2, HID)     f32  coordinate part of the first layer
    # w2_ref:     (HID, OUT)   bf16 second layer (narrow, no lane padding)
    # b2_ref:     (1, OUT)     f32
    # out_ref:    (1, TM, OUT) f32
    coords = coords_ref[...]
    w1c = w1c_ref[...]
    # First layer, coordinate part: K=2 -> two VPU broadcast FMAs instead of a
    # heavily padded MXU matmul; co-issues with the MXU matmul below.
    cp = coords[:, 0:1] * w1c[0:1, :] + coords[:, 1:2] * w1c[1:2, :]   # (TM, HID)
    h = jnp.maximum(cp + camb1_ref[0], 0.0)                            # (TM, HID)
    out = jnp.dot(h.astype(jnp.bfloat16), w2_ref[...],
                  preferred_element_type=jnp.float32) + b2_ref[...]    # (TM, OUT)
    out_ref[0] = out.astype(out_ref.dtype)


def _raster_mlp(coords, camb1, w1c, w2, b2, *, tm):
    """coords (HW, 2), camb1 (B, HID) -> (B, HW, OUT) in f32."""
    HW = coords.shape[0]
    B, HID = camb1.shape
    OUT = w2.shape[1]
    camb1_3d = camb1.reshape(B, 1, HID)   # so the per-camera block is (1, 1, HID)

    grid = (B, HW // tm)
    return pl.pallas_call(
        _raster_tile_kernel,
        out_shape=jax.ShapeDtypeStruct((B, HW, OUT), jnp.float32),
        grid=grid,
        in_specs=[
            pl.BlockSpec((tm, 2), lambda b, t: (t, 0)),        # coords row tile
            pl.BlockSpec((1, 1, HID), lambda b, t: (b, 0, 0)),  # per-camera proj
            pl.BlockSpec((2, HID), lambda b, t: (0, 0)),        # w1 (coords part)
            pl.BlockSpec((HID, OUT), lambda b, t: (0, 0)),      # w2 (bf16)
            pl.BlockSpec((1, OUT), lambda b, t: (0, 0)),        # b2
        ],
        out_specs=pl.BlockSpec((1, tm, OUT), lambda b, t: (b, t, 0)),
        compiler_params=pltpu.CompilerParams(
            dimension_semantics=("parallel", "parallel"),   # megacore / v7x 2-TC
            vmem_limit_bytes=32 * 1024 * 1024,
        ),
    )(coords, camb1_3d, w1c, w2, b2)


@functools.partial(jax.jit, static_argnames=("height", "width", "tm"))
def _rasterize(camera, coords, w1_coords, w1_cam, b1, w2_bf16, b2,
               *, height, width, tm):
    """Full jitted forward: tiny camera projection (XLA) + Pallas pixel MLP."""
    camb1 = jnp.dot(camera, w1_cam) + b1                       # (B, HID), tiny
    out = _raster_mlp(coords, camb1, w1_coords, w2_bf16, b2, tm=tm)  # (B, HW, OUT)
    B = camera.shape[0]
    out_ch = w2_bf16.shape[1]
    return out.reshape(B, height, width, out_ch)               # NHWC RGBA


# ----------------------------------------------------------------------------
# A concrete synthetic rasterizer (the wrapped callable).
# ----------------------------------------------------------------------------
class NeuralRasterizer:
    """Camera-conditioned per-pixel MLP rasterizer. Callable, like wisp expects."""

    def __init__(self, cam_dim=16, hidden=32, out_channels=4, height=16, width=16):
        self.cam_dim = cam_dim
        self.hidden = hidden
        self.out_channels = out_channels
        self.height = height
        self.width = width
        in_dim = 2 + cam_dim  # (x, y) pixel coords + camera params

        # Deterministic parameter init (synthetic; no checkpoint loading).
        key = jax.random.PRNGKey(0)
        k1, k2, k3, k4 = jax.random.split(key, 4)
        self.w1 = (jax.random.normal(k1, (in_dim, hidden), jnp.float32)
                   / jnp.sqrt(in_dim))
        self.b1 = jax.random.normal(k2, (1, hidden), jnp.float32) * 0.01
        self.w2 = (jax.random.normal(k3, (hidden, out_channels), jnp.float32)
                   / jnp.sqrt(hidden))
        self.b2 = jax.random.normal(k4, (1, out_channels), jnp.float32) * 0.01

        # Kernel-friendly layout (built once, not per call):
        #  * split w1: first layer is linear, so feat@w1 == coords@w1[:2] + cam@w1[2:]
        #    -> the (B, HW, 2+cam) feature tensor is never built.
        #  * bf16 second-layer weights (f32 accumulation inside the kernel).
        self.w1_coords = self.w1[:2]                    # (2, HID)
        self.w1_cam = self.w1[2:]                       # (CAM, HID)
        self.w2_bf16 = self.w2.astype(jnp.bfloat16)     # (HID, OUT)

        # Pixel-center coordinates, shared across all cameras: (HW, 2).
        ys = (jnp.arange(height, dtype=jnp.float32) + 0.5) / height
        xs = (jnp.arange(width, dtype=jnp.float32) + 0.5) / width
        gy, gx = jnp.meshgrid(ys, xs, indexing="ij")    # (H, W)
        self.coords = jnp.stack([gx, gy], axis=-1).reshape(height * width, 2)

        # Row-tile size for the Pallas grid (kept well under VMEM even on v7x).
        self.tm = _pick_row_tile(height * width, max_tile=512)

    def __call__(self, camera):
        # camera: (B, cam_dim) camera parameter vectors.
        # TODO(synk): wisp rasterizers may return a Renderbuffer container;
        #             here we return a plain NHWC RGBA array.
        return _rasterize(camera, self.coords, self.w1_coords, self.w1_cam,
                          self.b1, self.w2_bf16, self.b2,
                          height=self.height, width=self.width, tm=self.tm)


# ----------------------------------------------------------------------------
# RasterizationPipeline: thin wrapper, identical semantics to the torch module.
# ----------------------------------------------------------------------------
class RasterizationPipeline:
    """Wrapper class hinting that the wrapped object is a rasterizer relying on
    camera input rather than rays. Forward simply invokes the rasterizer."""

    def __init__(self, rasterizer):
        self.rasterizer = rasterizer

    def __call__(self, *args, **kwargs):
        return self.rasterizer(*args, **kwargs)

    # torch-style alias
    forward = __call__


# ----------------------------------------------------------------------------
# Reference (pure JAX f32, un-split weights, materialized feat) for sanity check.
# The kernel runs the second matmul with bf16 operands, hence the relaxed
# tolerance against this full-f32 ground truth.
# ----------------------------------------------------------------------------
def _reference(rast, camera):
    B = camera.shape[0]
    H, W = rast.height, rast.width
    ys = (jnp.arange(H, dtype=jnp.float32) + 0.5) / H
    xs = (jnp.arange(W, dtype=jnp.float32) + 0.5) / W
    gy, gx = jnp.meshgrid(ys, xs, indexing="ij")
    coords = jnp.stack([gx, gy], axis=-1).reshape(H * W, 2)
    coords = jnp.broadcast_to(coords[None], (B, H * W, 2))
    cam = jnp.broadcast_to(camera[:, None, :], (B, H * W, rast.cam_dim))
    feat = jnp.concatenate([coords, cam], axis=-1)
    h = jnp.maximum(jnp.einsum("bpi,ih->bph", feat, rast.w1) + rast.b1, 0.0)
    o = jnp.einsum("bph,ho->bpo", h, rast.w2) + rast.b2
    return o.reshape(B, H, W, rast.out_channels)


if __name__ == "__main__":
    # Small deterministic example: batch=2 cameras, 16x16 image, cam_dim=16.
    key = jax.random.PRNGKey(0)
    camera = jax.random.normal(key, (2, 16), jnp.float32)

    rasterizer = NeuralRasterizer(cam_dim=16, hidden=32, out_channels=4,
                                  height=16, width=16)
    pipeline = RasterizationPipeline(rasterizer)

    out = pipeline(camera)
    out = jax.block_until_ready(out)

    ref = _reference(rasterizer, camera)
    assert out.shape == (2, 16, 16, 4), out.shape
    # bf16 operands in the second matmul (f32 accumulation) -> relaxed tolerance.
    assert jnp.allclose(out, ref, atol=5e-2, rtol=5e-2), "mismatch vs reference"

    print("KERNEL_OK")
</pallas_src>

<mosaic_0001>
module attributes {stable_mosaic.version = 11 : i64} {
  func.func @_raster_tile_kernel(%arg0: i32, %arg1: i32, %arg2: memref<256x2xf32, #tpu.memory_space<vmem>>, %arg3: memref<1x1x32xf32, #tpu.memory_space<vmem>>, %arg4: memref<2x32xf32, #tpu.memory_space<vmem>>, %arg5: memref<32x4xbf16, #tpu.memory_space<vmem>>, %arg6: memref<1x4xf32, #tpu.memory_space<vmem>>, %arg7: memref<1x256x4xf32, #tpu.memory_space<vmem>>) attributes {dimension_semantics = [#tpu.dimension_semantics<parallel>, #tpu.dimension_semantics<parallel>], iteration_bounds = array<i64: 2, 1>, scalar_prefetch = 0 : i64, scratch_operands = 0 : i64, tpu.core_type = #tpu.core_type<tc>, window_params = [{transform_indices = @transform_0, window_bounds = array<i64: 256, 2>}, {transform_indices = @transform_1, window_bounds = array<i64: 1, 1, 32>}, {pipeline_mode = #tpu.pipeline_mode<synchronous>, transform_indices = @transform_2, window_bounds = array<i64: 2, 32>}, {pipeline_mode = #tpu.pipeline_mode<synchronous>, transform_indices = @transform_3, window_bounds = array<i64: 32, 4>}, {pipeline_mode = #tpu.pipeline_mode<synchronous>, transform_indices = @transform_4, window_bounds = array<i64: 1, 4>}, {transform_indices = @transform_5, window_bounds = array<i64: 1, 256, 4>}]} {
    %c0 = arith.constant 0 : index
    %c0_0 = arith.constant 0 : index
    %0 = vector.load %arg2[%c0, %c0_0] : memref<256x2xf32, #tpu.memory_space<vmem>>, vector<256x2xf32>
    %c0_1 = arith.constant 0 : index
    %c0_2 = arith.constant 0 : index
    %1 = vector.load %arg4[%c0_1, %c0_2] : memref<2x32xf32, #tpu.memory_space<vmem>>, vector<2x32xf32>
    %2 = vector.extract_strided_slice %0 {offsets = [0, 0], sizes = [256, 1], strides = [1, 1]} : vector<256x2xf32> to vector<256x1xf32>
    %3 = vector.extract_strided_slice %1 {offsets = [0, 0], sizes = [1, 32], strides = [1, 1]} : vector<2x32xf32> to vector<1x32xf32>
    %4 = vector.broadcast %2 : vector<256x1xf32> to vector<256x32xf32>
    %5 = vector.broadcast %3 : vector<1x32xf32> to vector<256x32xf32>
    %6 = arith.mulf %4, %5 : vector<256x32xf32>
    %7 = vector.extract_strided_slice %0 {offsets = [0, 1], sizes = [256, 1], strides = [1, 1]} : vector<256x2xf32> to vector<256x1xf32>
    %8 = vector.extract_strided_slice %1 {offsets = [1, 0], sizes = [1, 32], strides = [1, 1]} : vector<2x32xf32> to vector<1x32xf32>
    %9 = vector.broadcast %7 : vector<256x1xf32> to vector<256x32xf32>
    %10 = vector.broadcast %8 : vector<1x32xf32> to vector<256x32xf32>
    %11 = arith.mulf %9, %10 : vector<256x32xf32>
    %12 = arith.addf %6, %11 : vector<256x32xf32>
    %c0_3 = arith.constant 0 : index
    %c0_4 = arith.constant 0 : index
    %c0_5 = arith.constant 0 : index
    %13 = vector.load %arg3[%c0_3, %c0_4, %c0_5] : memref<1x1x32xf32, #tpu.memory_space<vmem>>, vector<1x1x32xf32>
    %14 = vector.shape_cast %13 : vector<1x1x32xf32> to vector<1x32xf32>
    %15 = vector.broadcast %14 : vector<1x32xf32> to vector<256x32xf32>
    %16 = arith.addf %12, %15 : vector<256x32xf32>
    %cst = arith.constant 0.000000e+00 : f32
    %17 = vector.broadcast %cst : f32 to vector<256x32xf32>
    %18 = arith.maximumf %16, %17 : vector<256x32xf32>
    %19 = arith.truncf %18 : vector<256x32xf32> to vector<256x32xbf16>
    %c0_6 = arith.constant 0 : index
    %c0_7 = arith.constant 0 : index
    %20 = vector.load %arg5[%c0_6, %c0_7] : memref<32x4xbf16, #tpu.memory_space<vmem>>, vector<32x4xbf16>
    %cst_8 = arith.constant dense<0.000000e+00> : vector<256x4xf32>
    %21 = tpu.matmul %19, %20, %cst_8 {dimension_numbers = #tpu.dot_dimension_numbers<[1], [0], [0], [1], [0, 0, 1, 1], [], []>} : vector<256x32xbf16>, vector<32x4xbf16>, vector<256x4xf32> -> vector<256x4xf32>
    %c0_9 = arith.constant 0 : index
    %c0_10 = arith.constant 0 : index
    %22 = vector.load %arg6[%c0_9, %c0_10] : memref<1x4xf32, #tpu.memory_space<vmem>>, vector<1x4xf32>
    %23 = vector.broadcast %22 : vector<1x4xf32> to vector<256x4xf32>
    %24 = arith.addf %21, %23 : vector<256x4xf32>
    %c0_11 = arith.constant 0 : index
    %c0_12 = arith.constant 0 : index
    %c0_13 = arith.constant 0 : index
    %25 = vector.load %arg7[%c0_11, %c0_12, %c0_13] : memref<1x256x4xf32, #tpu.memory_space<vmem>>, vector<1x256x4xf32>
    %26 = vector.shape_cast %25 : vector<1x256x4xf32> to vector<256x4xf32>
    %27 = vector.shape_cast %24 : vector<256x4xf32> to vector<1x256x4xf32>
    tpu.vector_store %arg7[%c0_11, %c0_12, %c0_13], %27 {strides = array<i32>} : memref<1x256x4xf32, #tpu.memory_space<vmem>>, vector<1x256x4xf32>,
    return
  }
  func.func @transform_0(%arg0: i32, %arg1: i32) -> (i32, i32) {
    %c0_i32 = arith.constant 0 : i32
    %c0_i32_0 = arith.constant 0 : i32
    return %arg1, %c0_i32 : i32, i32
  }
  func.func @transform_1(%arg0: i32, %arg1: i32) -> (i32, i32, i32) {
    %c0_i32 = arith.constant 0 : i32
    %c0_i32_0 = arith.constant 0 : i32
    %c0_i32_1 = arith.constant 0 : i32
    return %arg0, %c0_i32, %c0_i32_0 : i32, i32, i32
  }
  func.func @transform_2(%arg0: i32, %arg1: i32) -> (i32, i32) {
    %c0_i32 = arith.constant 0 : i32
    %c0_i32_0 = arith.constant 0 : i32
    %c0_i32_1 = arith.constant 0 : i32
    return %c0_i32, %c0_i32_0 : i32, i32
  }
  func.func @transform_3(%arg0: i32, %arg1: i32) -> (i32, i32) {
    %c0_i32 = arith.constant 0 : i32
    %c0_i32_0 = arith.constant 0 : i32
    %c0_i32_1 = arith.constant 0 : i32
    return %c0_i32, %c0_i32_0 : i32, i32
  }
  func.func @transform_4(%arg0: i32, %arg1: i32) -> (i32, i32) {
    %c0_i32 = arith.constant 0 : i32
    %c0_i32_0 = arith.constant 0 : i32
    %c0_i32_1 = arith.constant 0 : i32
    return %c0_i32, %c0_i32_0 : i32, i32
  }
  func.func @transform_5(%arg0: i32, %arg1: i32) -> (i32, i32, i32) {
    %c0_i32 = arith.constant 0 : i32
    %c0_i32_0 = arith.constant 0 : i32
    return %arg0, %arg1, %c0_i32 : i32, i32, i32
  }
}

</mosaic_0001>

<llo_original>
// kernel: _rasterize.1
$region0: #{_rasterize.1}
  #allocation0 [shape = 'u32[]', space=smem, size = 0x4, offset = 0x4, fixed_abs, tag = 'smem constant byte address 0x4 - core index']
  #allocation1 [shape = 'u32[72,128]{1,0:T(1,128)}', space=vmem, size = 0x9000, scoped, tag = 'internal scratch']
  %s0 = inlined_call_operand.vmem [shape: f32[256,2], index: 0, kind: input, shape index: {}]
  %s1 = inlined_call_operand.vmem [shape: f32[2,1,32], index: 1, kind: input, shape index: {}]
  %s2 = inlined_call_operand.vmem [shape: f32[2,32], index: 2, kind: input, shape index: {}]
  %s3 = inlined_call_operand.vmem [shape: bf16[32,4], index: 3, kind: input, shape index: {}]
  %s4 = inlined_call_operand.vmem [shape: f32[1,4], index: 4, kind: input, shape index: {}]
  %s5 = inlined_call_operand.vmem [shape: f32[2,256,4], index: 5, kind: output, shape index: {}]
  %s6 = sld [smem:[#allocation0]]
  $region53: #{_rasterize.1} parent=0
    _
  %s8 = ssub.s32 1, %s6
  %s9 = scalar_select 0, %s8, %s6
  loop: start=0, step=1, limit=4
  $region2: #{_rasterize.1} parent=0 // loop_pre_header
    _
  $region3: #{_rasterize.1} parent=0 // loop_header
    %s11 = sphi 0, %s15
    %p12 = scmp.ge.s32.totalorder %s11, 4
    %s18 = sphi 0, %s30
    %s19 = sphi 0, %s26
    %s20 = sphi 0, %s18
    %s21 = sphi 0, %s19
    %s22 = sphi 0, %s20
    %s23 = sphi 0, %s21
    %s33 = sphi 0, %s35
    %s36 = sphi 0, %s33
    %s37 = sphi 0, %s36
    %s53 = sphi 0, %s37
    %s59 = sphi 0, %s61
    %s62 = sphi 0, %s59
    %s63 = sphi 0, %s62
    %s79 = sphi 0, %s63
    %s83 = sphi 0, %s83
    %s85 = sphi 0, %s83
    %s86 = sphi 0, %s85
    %s100 = sphi 0, %s86
    %s104 = sphi 0, %s104
    %s106 = sphi 0, %s104
    %s107 = sphi 0, %s106
    %s121 = sphi 0, %s107
    %s125 = sphi 0, %s125
    %s127 = sphi 0, %s125
    %s128 = sphi 0, %s127
    %s142 = sphi 0, %s128
    %s150 = sphi 0, %s152
    %s153 = sphi 0, %s150
    %s154 = sphi 0, %s153
    %s170 = sphi 0, %s154
  $region4: #{_rasterize.1} parent=0 // loop_header_branch
    %14 = sbr.rel (%p12) target = $region8
  $region5: #{_rasterize.1} parent=0 // loop_body
    %s16 = ssub.s32 %s11, 1
    %s17 = ssub.s32 %s11, 2
    %s24 = sadd.s32 1, %s19
    %p25 = scmp.ge.s32.totalorder %s24, 1
    %s26 = scalar_select %p25, 0, %s24
    %s27 = sadd.s32 1, %s18
    %s28 = scalar_select %p25, %s27, %s18
    %p29 = scmp.ge.s32.totalorder %s28, 2
    %s30 = scalar_select %p29, 0, %s28
    %s31 = ssub.s32 %s19, %s26
    %p32 = scmp.eq.s32.totalorder %s31, 0
    %s34 = sadd.s32 %s33, 1
    %s35 = scalar_select %p32, %s33, %s34
    %p38 = pneg %p32
    %p39 = scmp.eq.s32.totalorder %s11, 1
    %p40 = por %p38, %p39
    %p41 = scmp.ne.s32.totalorder %s33, %s36
    %p42 = scmp.eq.s32.totalorder %s11, 0
    %p43 = por %p41, %p42
    %p44 = scmp.ne.s32.totalorder %s33, %s36
    %p45 = scmp.eq.s32.totalorder %s16, 1
    %p46 = por %p44, %p45
    %p47 = scmp.ne.s32.totalorder %s36, %s37
    %p48 = scmp.eq.s32.totalorder %s16, 0
    %p49 = por %p47, %p48
    %p50 = scmp.ne.s32.totalorder %s36, %s37
    %p51 = scmp.eq.s32.totalorder %s17, 1
    %p52 = por %p50, %p51
    %p54 = scmp.ne.s32.totalorder %s37, %s53
    %p55 = scmp.eq.s32.totalorder %s17, 0
    %p56 = por %p54, %p55
    %s57 = ssub.s32 %s18, %s30
    %p58 = scmp.eq.s32.totalorder %s57, 0
    %s60 = sadd.s32 %s59, 1
    %s61 = scalar_select %p58, %s59, %s60
    %p64 = pneg %p58
    %p65 = scmp.eq.s32.totalorder %s11, 1
    %p66 = por %p64, %p65
    %p67 = scmp.ne.s32.totalorder %s59, %s62
    %p68 = scmp.eq.s32.totalorder %s11, 0
    %p69 = por %p67, %p68
    %p70 = scmp.ne.s32.totalorder %s59, %s62
    %p71 = scmp.eq.s32.totalorder %s16, 1
    %p72 = por %p70, %p71
    %p73 = scmp.ne.s32.totalorder %s62, %s63
    %p74 = scmp.eq.s32.totalorder %s16, 0
    %p75 = por %p73, %p74
    %p76 = scmp.ne.s32.totalorder %s62, %s63
    %p77 = scmp.eq.s32.totalorder %s17, 1
    %p78 = por %p76, %p77
    %p80 = scmp.ne.s32.totalorder %s63, %s79
    %p81 = scmp.eq.s32.totalorder %s17, 0
    %p82 = por %p80, %p81
    %s84 = sadd.s32 %s83, 1
    %p87 = scmp.eq.s32.totalorder %s11, 1
    %p88 = scmp.ne.s32.totalorder %s83, %s85
    %p89 = scmp.eq.s32.totalorder %s11, 0
    %p90 = por %p88, %p89
    %p91 = scmp.ne.s32.totalorder %s83, %s85
    %p92 = scmp.eq.s32.totalorder %s16, 1
    %p93 = por %p91, %p92
    %p94 = scmp.ne.s32.totalorder %s85, %s86
    %p95 = scmp.eq.s32.totalorder %s16, 0
    %p96 = por %p94, %p95
    %p97 = scmp.ne.s32.totalorder %s85, %s86
    %p98 = scmp.eq.s32.totalorder %s17, 1
    %p99 = por %p97, %p98
    %p101 = scmp.ne.s32.totalorder %s86, %s100
    %p102 = scmp.eq.s32.totalorder %s17, 0
    %p103 = por %p101, %p102
    %s105 = sadd.s32 %s104, 1
    %p108 = scmp.eq.s32.totalorder %s11, 1
    %p109 = scmp.ne.s32.totalorder %s104, %s106
    %p110 = scmp.eq.s32.totalorder %s11, 0
    %p111 = por %p109, %p110
    %p112 = scmp.ne.s32.totalorder %s104, %s106
    %p113 = scmp.eq.s32.totalorder %s16, 1
    %p114 = por %p112, %p113
    %p115 = scmp.ne.s32.totalorder %s106, %s107
    %p116 = scmp.eq.s32.totalorder %s16, 0
    %p117 = por %p115, %p116
    %p118 = scmp.ne.s32.totalorder %s106, %s107
    %p119 = scmp.eq.s32.totalorder %s17, 1
    %p120 = por %p118, %p119
    %p122 = scmp.ne.s32.totalorder %s107, %s121
    %p123 = scmp.eq.s32.totalorder %s17, 0
    %p124 = por %p122, %p123
    %s126 = sadd.s32 %s125, 1
    %p129 = scmp.eq.s32.totalorder %s11, 1
    %p130 = scmp.ne.s32.totalorder %s125, %s127
    %p131 = scmp.eq.s32.totalorder %s11, 0
    %p132 = por %p130, %p131
    %p133 = scmp.ne.s32.totalorder %s125, %s127
    %p134 = scmp.eq.s32.totalorder %s16, 1
    %p135 = por %p133, %p134
    %p136 = scmp.ne.s32.totalorder %s127, %s128
    %p137 = scmp.eq.s32.totalorder %s16, 0
    %p138 = por %p136, %p137
    %p139 = scmp.ne.s32.totalorder %s127, %s128
    %p140 = scmp.eq.s32.totalorder %s17, 1
    %p141 = por %p139, %p140
    %p143 = scmp.ne.s32.totalorder %s128, %s142
    %p144 = scmp.eq.s32.totalorder %s17, 0
    %p145 = por %p143, %p144
    %s146 = ssub.s32 %s18, %s30
    %s147 = ssub.s32 %s19, %s26
    %s148 = sor.u32 %s146, %s147
    %p149 = scmp.eq.s32.totalorder %s148, 0
    %s151 = sadd.s32 %s150, 1
    %s152 = scalar_select %p149, %s150, %s151
    %p155 = pneg %p149
    %p156 = scmp.eq.s32.totalorder %s11, 1
    %p157 = por %p155, %p156
    %p158 = scmp.ne.s32.totalorder %s150, %s153
    %p159 = scmp.eq.s32.totalorder %s11, 0
    %p160 = por %p158, %p159
    %p161 = scmp.ne.s32.totalorder %s150, %s153
    %p162 = scmp.eq.s32.totalorder %s16, 1
    %p163 = por %p161, %p162
    %p164 = scmp.ne.s32.totalorder %s153, %s154
    %p165 = scmp.eq.s32.totalorder %s16, 0
    %p166 = por %p164, %p165
    %p167 = scmp.ne.s32.totalorder %s153, %s154
    %p168 = scmp.eq.s32.totalorder %s17, 1
    %p169 = por %p167, %p168
    %p171 = scmp.ne.s32.totalorder %s154, %s170
    %p172 = scmp.eq.s32.totalorder %s17, 0
    %p173 = por %p171, %p172
    %p174 = scmp.le.s32.totalorder 1, %s11
    %p175 = scmp.lt.s32.totalorder %s11, 3
    %p176 = pnand %p174, %p175
    %p177 = pneg %p176
    // Predicated region
    $region9: #{_rasterize.1} parent=5 // pred_check
      _
    $region10: #{_rasterize.1} parent=5 // pred_check_branch
      %179 = sbr.rel (%p176) target = $region12
    $region11: #{_rasterize.1} parent=5 // pred_region
      %s180 = ssub.s32 %s11, 1
      // Predicated region
      $region13: #{_rasterize.1} parent=11 // pred_check
        %p181 = pneg %p49
      $region14: #{_rasterize.1} parent=11 // pred_check_branch
        %183 = sbr.rel (%p181) target = $region16
      $region15: #{_rasterize.1} parent=11 // pred_region
        %s184 = smul.u32 32, %s21
        %p185 = scmp.lt.s32.totalorder %s184, 31
        %s186 = scalar_select %p185, %s184, 31
        %s187 = smul.addr %s186, 8
        %s188 = scalar_lea.vmem %s0, %s187
        %s189 = smul.u32 32, %s21
      $region16: #{_rasterize.1} parent=11 // pred_fallthru
        _
      // Predicated region
      $region17: #{_rasterize.1} parent=11 // pred_check
        %p190 = pneg %p96
      $region18: #{_rasterize.1} parent=11 // pred_check_branch
        %192 = sbr.rel (%p190) target = $region20
      $region19: #{_rasterize.1} parent=11 // pred_region
        _
      $region20: #{_rasterize.1} parent=11 // pred_fallthru
        _
      // Predicated region
      $region21: #{_rasterize.1} parent=11 // pred_check
        %p193 = pneg %p117
      $region22: #{_rasterize.1} parent=11 // pred_check_branch
        %195 = sbr.rel (%p193) target = $region24
      $region23: #{_rasterize.1} parent=11 // pred_region
        _
      $region24: #{_rasterize.1} parent=11 // pred_fallthru
        _
      // Predicated region
      $region25: #{_rasterize.1} parent=11 // pred_check
        %p196 = pneg %p138
      $region26: #{_rasterize.1} parent=11 // pred_check_branch
        %198 = sbr.rel (%p196) target = $region28
      $region27: #{_rasterize.1} parent=11 // pred_region
        _
      $region28: #{_rasterize.1} parent=11 // pred_fallthru
        _
    $region12: #{_rasterize.1} parent=5 // pred_fallthru
      _
    %p199 = scmp.lt.s32.totalorder %s11, 2
    // Predicated region
    $region29: #{_rasterize.1} parent=5 // pred_check
      %p200 = pneg %p199
    $region30: #{_rasterize.1} parent=5 // pred_check_branch
      %202 = sbr.rel (%p200) target = $region32
    $region31: #{_rasterize.1} parent=5 // pred_region
      // Predicated region
      $region33: #{_rasterize.1} parent=31 // pred_check
        %p203 = pneg %p69
      $region34: #{_rasterize.1} parent=31 // pred_check_branch
        %205 = sbr.rel (%p203) target = $region36
      $region35: #{_rasterize.1} parent=31 // pred_region
        %p206 = scmp.lt.s32.totalorder %s18, 1
        %s207 = scalar_select %p206, %s18, 1
        %s208 = scalar_lea.vmem %s1, %s207
      $region36: #{_rasterize.1} parent=31 // pred_fallthru
        _
    $region32: #{_rasterize.1} parent=5 // pred_fallthru
      _
    %p209 = scmp.le.s32.totalorder 1, %s11
    %p210 = scmp.lt.s32.totalorder %s11, 3
    %p211 = pnand %p209, %p210
    %p212 = pneg %p211
    // Predicated region
    $region37: #{_rasterize.1} parent=5 // pred_check
      _
    $region38: #{_rasterize.1} parent=5 // pred_check_branch
      %214 = sbr.rel (%p211) target = $region40
    $region39: #{_rasterize.1} parent=5 // pred_region
      %s215 = ssub.s32 %s11, 1
      %s216 = smul.u32 32, %s21
      %p217 = scmp.lt.s32.totalorder %s216, 31
      %s218 = scalar_select %p217, %s216, 31
      %s219 = smul.addr %s218, 8
      %s220 = scalar_lea.vmem %s0, %s219
      %p221 = pneg %p49
      %p222 = pneg %p46
      %p223 = scmp.lt.s32.totalorder %s20, 1
      %s224 = scalar_select %p223, %s20, 1
      %s225 = scalar_lea.vmem %s1, %s224
      %p226 = pneg %p75
      %p227 = pneg %p72
      %p228 = pneg %p96
      %p229 = pneg %p93
      %p230 = pneg %p117
      %p231 = pneg %p114
      %p232 = pneg %p138
      %p233 = pneg %p135
      %p234 = pneg %p166
      %p235 = pneg %p163
      %s236 = smul.u32 32, %s21
      %p237 = scmp.lt.s32.totalorder %s20, 1
      %s238 = scalar_select %p237, %s20, 1
      %p239 = scmp.lt.s32.totalorder %s236, 31
      %s240 = scalar_select %p239, %s236, 31
      %s241 = smul.addr %s238, 32
      %s242 = sadd.s32 %s240, %s241
      %s243 = smul.addr %s242, 8
      %s244 = scalar_lea.vmem %s5, %s243
      %s245 = smul.u32 32, %s21
      %p246 = scmp.lt.s32.totalorder %s245, 31
      %s247 = scalar_select %p246, %s245, 31
      %s248 = smul.addr %s247, 8
      %s249 = scalar_lea.vmem %s0, %s248
      %s250 = smul.u32 32, %s21
      %p251 = scmp.lt.s32.totalorder %s20, 1
      %s252 = scalar_select %p251, %s20, 1
      %s253 = scalar_lea.vmem %s1, %s252
      %s254 = smul.u32 32, %s21
      %p255 = scmp.lt.s32.totalorder %s20, 1
      %s256 = scalar_select %p255, %s20, 1
      %p257 = scmp.lt.s32.totalorder %s254, 31
      %s258 = scalar_select %p257, %s254, 31
      %s259 = smul.addr %s256, 32
      %s260 = sadd.s32 %s258, %s259
      %s261 = smul.addr %s260, 8
      %s262 = scalar_lea.vmem %s5, %s261
      %s263 = smul.u32 32, %s21
      %v265 = vld [vmem:[%s249] sm:$0xff]
      %v266 = vld [vmem:[%s249 + $0x8] sm:$0xff]
      %v267 = vld [vmem:[%s249 + $0x10] sm:$0xff]
      %v268 = vld [vmem:[%s249 + $0x18] sm:$0xff]
      %v269 = vld [vmem:[%s249 + $0x20] sm:$0xff]
      %v270 = vld [vmem:[%s249 + $0x28] sm:$0xff]
      %v271 = vld [vmem:[%s249 + $0x30] sm:$0xff]
      %v272 = vld [vmem:[%s249 + $0x38] sm:$0xff]
      %v273 = vld [vmem:[%s249 + $0x40] sm:$0xff]
      %v274 = vld [vmem:[%s249 + $0x48] sm:$0xff]
      %v275 = vld [vmem:[%s249 + $0x50] sm:$0xff]
      %v276 = vld [vmem:[%s249 + $0x58] sm:$0xff]
      %v277 = vld [vmem:[%s249 + $0x60] sm:$0xff]
      %v278 = vld [vmem:[%s249 + $0x68] sm:$0xff]
      %v279 = vld [vmem:[%s249 + $0x70] sm:$0xff]
      %v280 = vld [vmem:[%s249 + $0x78] sm:$0xff]
      %v281 = vld [vmem:[%s249 + $0x80] sm:$0xff]
      %v282 = vld [vmem:[%s249 + $0x88] sm:$0xff]
      %v283 = vld [vmem:[%s249 + $0x90] sm:$0xff]
      %v284 = vld [vmem:[%s249 + $0x98] sm:$0xff]
      %v285 = vld [vmem:[%s249 + $0xa0] sm:$0xff]
      %v286 = vld [vmem:[%s249 + $0xa8] sm:$0xff]
      %v287 = vld [vmem:[%s249 + $0xb0] sm:$0xff]
      %v288 = vld [vmem:[%s249 + $0xb8] sm:$0xff]
      %v289 = vld [vmem:[%s249 + $0xc0] sm:$0xff]
      %v290 = vld [vmem:[%s249 + $0xc8] sm:$0xff]
      %v291 = vld [vmem:[%s249 + $0xd0] sm:$0xff]
      %v292 = vld [vmem:[%s249 + $0xd8] sm:$0xff]
      %v293 = vld [vmem:[%s249 + $0xe0] sm:$0xff]
      %v294 = vld [vmem:[%s249 + $0xe8] sm:$0xff]
      %v295 = vld [vmem:[%s249 + $0xf0] sm:$0xff]
      %v296 = vld [vmem:[%s249 + $0xf8] sm:$0xff]
      %v297 = vld [vmem:[%s2] sm:$0x3]
      %299 = vset.pattern.permute.xlu0 0
      %300 = vperm.xlu0 %299, %v265
      %v301 = vpop.permute.xlu0 %300
      %304 = vset.pattern.permute.xlu0 0
      %305 = vperm.xlu0 %304, %v266
      %v306 = vpop.permute.xlu0 %305
      %309 = vset.pattern.permute.xlu0 0
      %310 = vperm.xlu0 %309, %v267
      %v311 = vpop.permute.xlu0 %310
      %314 = vset.pattern.permute.xlu0 0
      %315 = vperm.xlu0 %314, %v268
      %v316 = vpop.permute.xlu0 %315
      %319 = vset.pattern.permute.xlu0 0
      %320 = vperm.xlu0 %319, %v269
      %v321 = vpop.permute.xlu0 %320
      %324 = vset.pattern.permute.xlu0 0
      %325 = vperm.xlu0 %324, %v270
      %v326 = vpop.permute.xlu0 %325
      %329 = vset.pattern.permute.xlu0 0
      %330 = vperm.xlu0 %329, %v271
      %v331 = vpop.permute.xlu0 %330
      %334 = vset.pattern.permute.xlu0 0
      %335 = vperm.xlu0 %334, %v272
      %v336 = vpop.permute.xlu0 %335
      %339 = vset.pattern.permute.xlu0 0
      %340 = vperm.xlu0 %339, %v273
      %v341 = vpop.permute.xlu0 %340
      %344 = vset.pattern.permute.xlu0 0
      %345 = vperm.xlu0 %344, %v274
      %v346 = vpop.permute.xlu0 %345
      %349 = vset.pattern.permute.xlu0 0
      %350 = vperm.xlu0 %349, %v275
      %v351 = vpop.permute.xlu0 %350
      %354 = vset.pattern.permute.xlu0 0
      %355 = vperm.xlu0 %354, %v276
      %v356 = vpop.permute.xlu0 %355
      %359 = vset.pattern.permute.xlu0 0
      %360 = vperm.xlu0 %359, %v277
      %v361 = vpop.permute.xlu0 %360
      %364 = vset.pattern.permute.xlu0 0
      %365 = vperm.xlu0 %364, %v278
      %v366 = vpop.permute.xlu0 %365
      %369 = vset.pattern.permute.xlu0 0
      %370 = vperm.xlu0 %369, %v279
      %v371 = vpop.permute.xlu0 %370
      %374 = vset.pattern.permute.xlu0 0
      %375 = vperm.xlu0 %374, %v280
      %v376 = vpop.permute.xlu0 %375
      %379 = vset.pattern.permute.xlu0 0
      %380 = vperm.xlu0 %379, %v281
      %v381 = vpop.permute.xlu0 %380
      %384 = vset.pattern.permute.xlu0 0
      %385 = vperm.xlu0 %384, %v282
      %v386 = vpop.permute.xlu0 %385
      %389 = vset.pattern.permute.xlu0 0
      %390 = vperm.xlu0 %389, %v283
      %v391 = vpop.permute.xlu0 %390
      %394 = vset.pattern.permute.xlu0 0
      %395 = vperm.xlu0 %394, %v284
      %v396 = vpop.permute.xlu0 %395
      %399 = vset.pattern.permute.xlu0 0
      %400 = vperm.xlu0 %399, %v285
      %v401 = vpop.permute.xlu0 %400
      %404 = vset.pattern.permute.xlu0 0
      %405 = vperm.xlu0 %404, %v286
      %v406 = vpop.permute.xlu0 %405
      %409 = vset.pattern.permute.xlu0 0
      %410 = vperm.xlu0 %409, %v287
      %v411 = vpop.permute.xlu0 %410
      %414 = vset.pattern.permute.xlu0 0
      %415 = vperm.xlu0 %414, %v288
      %v416 = vpop.permute.xlu0 %415
      %419 = vset.pattern.permute.xlu0 0
      %420 = vperm.xlu0 %419, %v289
      %v421 = vpop.permute.xlu0 %420
      %424 = vset.pattern.permute.xlu0 0
      %425 = vperm.xlu0 %424, %v290
      %v426 = vpop.permute.xlu0 %425
      %429 = vset.pattern.permute.xlu0 0
      %430 = vperm.xlu0 %429, %v291
      %v431 = vpop.permute.xlu0 %430
      %434 = vset.pattern.permute.xlu0 0
      %435 = vperm.xlu0 %434, %v292
      %v436 = vpop.permute.xlu0 %435
      %439 = vset.pattern.permute.xlu0 0
      %440 = vperm.xlu0 %439, %v293
      %v441 = vpop.permute.xlu0 %440
      %444 = vset.pattern.permute.xlu0 0
      %445 = vperm.xlu0 %444, %v294
      %v446 = vpop.permute.xlu0 %445
      %449 = vset.pattern.permute.xlu0 0
      %450 = vperm.xlu0 %449, %v295
      %v451 = vpop.permute.xlu0 %450
      %454 = vset.pattern.permute.xlu0 0
      %455 = vperm.xlu0 %454, %v296
      %v456 = vpop.permute.xlu0 %455
      %v458 = vperm.slane %v297, 0
      %v459 = vmul.f32 %v301, %v458
      %v460 = vmul.f32 %v306, %v458
      %v461 = vmul.f32 %v311, %v458
      %v462 = vmul.f32 %v316, %v458
      %v463 = vmul.f32 %v321, %v458
      %v464 = vmul.f32 %v326, %v458
      %v465 = vmul.f32 %v331, %v458
      %v466 = vmul.f32 %v336, %v458
      %v467 = vmul.f32 %v341, %v458
      %v468 = vmul.f32 %v346, %v458
      %v469 = vmul.f32 %v351, %v458
      %v470 = vmul.f32 %v356, %v458
      %v471 = vmul.f32 %v361, %v458
      %v472 = vmul.f32 %v366, %v458
      %v473 = vmul.f32 %v371, %v458
      %v474 = vmul.f32 %v376, %v458
      %v475 = vmul.f32 %v381, %v458
      %v476 = vmul.f32 %v386, %v458
      %v477 = vmul.f32 %v391, %v458
      %v478 = vmul.f32 %v396, %v458
      %v479 = vmul.f32 %v401, %v458
      %v480 = vmul.f32 %v406, %v458
      %v481 = vmul.f32 %v411, %v458
      %v482 = vmul.f32 %v416, %v458
      %v483 = vmul.f32 %v421, %v458
      %v484 = vmul.f32 %v426, %v458
      %v485 = vmul.f32 %v431, %v458
      %v486 = vmul.f32 %v436, %v458
      %v487 = vmul.f32 %v441, %v458
      %v488 = vmul.f32 %v446, %v458
      %v489 = vmul.f32 %v451, %v458
      %v490 = vmul.f32 %v456, %v458
      %491 = vset.pattern.permute.xlu0 1
      %492 = vperm.xlu0 %491, %v265
      %v493 = vpop.permute.xlu0 %492
      %495 = vset.pattern.permute.xlu0 1
      %496 = vperm.xlu0 %495, %v266
      %v497 = vpop.permute.xlu0 %496
      %499 = vset.pattern.permute.xlu0 1
      %500 = vperm.xlu0 %499, %v267
      %v501 = vpop.permute.xlu0 %500
      %503 = vset.pattern.permute.xlu0 1
      %504 = vperm.xlu0 %503, %v268
      %v505 = vpop.permute.xlu0 %504
      %507 = vset.pattern.permute.xlu0 1
      %508 = vperm.xlu0 %507, %v269
      %v509 = vpop.permute.xlu0 %508
      %511 = vset.pattern.permute.xlu0 1
      %512 = vperm.xlu0 %511, %v270
      %v513 = vpop.permute.xlu0 %512
      %515 = vset.pattern.permute.xlu0 1
      %516 = vperm.xlu0 %515, %v271
      %v517 = vpop.permute.xlu0 %516
      %519 = vset.pattern.permute.xlu0 1
      %520 = vperm.xlu0 %519, %v272
      %v521 = vpop.permute.xlu0 %520
      %523 = vset.pattern.permute.xlu0 1
      %524 = vperm.xlu0 %523, %v273
      %v525 = vpop.permute.xlu0 %524
      %527 = vset.pattern.permute.xlu0 1
      %528 = vperm.xlu0 %527, %v274
      %v529 = vpop.permute.xlu0 %528
      %531 = vset.pattern.permute.xlu0 1
      %532 = vperm.xlu0 %531, %v275
      %v533 = vpop.permute.xlu0 %532
      %535 = vset.pattern.permute.xlu0 1
      %536 = vperm.xlu0 %535, %v276
      %v537 = vpop.permute.xlu0 %536
      %539 = vset.pattern.permute.xlu0 1
      %540 = vperm.xlu0 %539, %v277
      %v541 = vpop.permute.xlu0 %540
      %543 = vset.pattern.permute.xlu0 1
      %544 = vperm.xlu0 %543, %v278
      %v545 = vpop.permute.xlu0 %544
      %547 = vset.pattern.permute.xlu0 1
      %548 = vperm.xlu0 %547, %v279
      %v549 = vpop.permute.xlu0 %548
      %551 = vset.pattern.permute.xlu0 1
      %552 = vperm.xlu0 %551, %v280
      %v553 = vpop.permute.xlu0 %552
      %555 = vset.pattern.permute.xlu0 1
      %556 = vperm.xlu0 %555, %v281
      %v557 = vpop.permute.xlu0 %556
      %559 = vset.pattern.permute.xlu0 1
      %560 = vperm.xlu0 %559, %v282
      %v561 = vpop.permute.xlu0 %560
      %563 = vset.pattern.permute.xlu0 1
      %564 = vperm.xlu0 %563, %v283
      %v565 = vpop.permute.xlu0 %564
      %567 = vset.pattern.permute.xlu0 1
      %568 = vperm.xlu0 %567, %v284
      %v569 = vpop.permute.xlu0 %568
      %571 = vset.pattern.permute.xlu0 1
      %572 = vperm.xlu0 %571, %v285
      %v573 = vpop.permute.xlu0 %572
      %575 = vset.pattern.permute.xlu0 1
      %576 = vperm.xlu0 %575, %v286
      %v577 = vpop.permute.xlu0 %576
      %579 = vset.pattern.permute.xlu0 1
      %580 = vperm.xlu0 %579, %v287
      %v581 = vpop.permute.xlu0 %580
      %583 = vset.pattern.permute.xlu0 1
      %584 = vperm.xlu0 %583, %v288
      %v585 = vpop.permute.xlu0 %584
      %587 = vset.pattern.permute.xlu0 1
      %588 = vperm.xlu0 %587, %v289
      %v589 = vpop.permute.xlu0 %588
      %591 = vset.pattern.permute.xlu0 1
      %592 = vperm.xlu0 %591, %v290
      %v593 = vpop.permute.xlu0 %592
      %595 = vset.pattern.permute.xlu0 1
      %596 = vperm.xlu0 %595, %v291
      %v597 = vpop.permute.xlu0 %596
      %599 = vset.pattern.permute.xlu0 1
      %600 = vperm.xlu0 %599, %v292
      %v601 = vpop.permute.xlu0 %600
      %603 = vset.pattern.permute.xlu0 1
      %604 = vperm.xlu0 %603, %v293
      %v605 = vpop.permute.xlu0 %604
      %607 = vset.pattern.permute.xlu0 1
      %608 = vperm.xlu0 %607, %v294
      %v609 = vpop.permute.xlu0 %608
      %611 = vset.pattern.permute.xlu0 1
      %612 = vperm.xlu0 %611, %v295
      %v613 = vpop.permute.xlu0 %612
      %615 = vset.pattern.permute.xlu0 1
      %616 = vperm.xlu0 %615, %v296
      %v617 = vpop.permute.xlu0 %616
      %v619 = vperm.slane %v297, 1
      %v620 = vmul.f32 %v493, %v619
      %v621 = vmul.f32 %v497, %v619
      %v622 = vmul.f32 %v501, %v619
      %v623 = vmul.f32 %v505, %v619
      %v624 = vmul.f32 %v509, %v619
      %v625 = vmul.f32 %v513, %v619
      %v626 = vmul.f32 %v517, %v619
      %v627 = vmul.f32 %v521, %v619
      %v628 = vmul.f32 %v525, %v619
      %v629 = vmul.f32 %v529, %v619
      %v630 = vmul.f32 %v533, %v619
      %v631 = vmul.f32 %v537, %v619
      %v632 = vmul.f32 %v541, %v619
      %v633 = vmul.f32 %v545, %v619
      %v634 = vmul.f32 %v549, %v619
      %v635 = vmul.f32 %v553, %v619
      %v636 = vmul.f32 %v557, %v619
      %v637 = vmul.f32 %v561, %v619
      %v638 = vmul.f32 %v565, %v619
      %v639 = vmul.f32 %v569, %v619
      %v640 = vmul.f32 %v573, %v619
      %v641 = vmul.f32 %v577, %v619
      %v642 = vmul.f32 %v581, %v619
      %v643 = vmul.f32 %v585, %v619
      %v644 = vmul.f32 %v589, %v619
      %v645 = vmul.f32 %v593, %v619
      %v646 = vmul.f32 %v597, %v619
      %v647 = vmul.f32 %v601, %v619
      %v648 = vmul.f32 %v605, %v619
      %v649 = vmul.f32 %v609, %v619
      %v650 = vmul.f32 %v613, %v619
      %v651 = vmul.f32 %v617, %v619
      %v652 = vadd.f32 %v459, %v620
      %v653 = vadd.f32 %v460, %v621
      %v654 = vadd.f32 %v461, %v622
      %v655 = vadd.f32 %v462, %v623
      %v656 = vadd.f32 %v463, %v624
      %v657 = vadd.f32 %v464, %v625
      %v658 = vadd.f32 %v465, %v626
      %v659 = vadd.f32 %v466, %v627
      %v660 = vadd.f32 %v467, %v628
      %v661 = vadd.f32 %v468, %v629
      %v662 = vadd.f32 %v469, %v630
      %v663 = vadd.f32 %v470, %v631
      %v664 = vadd.f32 %v471, %v632
      %v665 = vadd.f32 %v472, %v633
      %v666 = vadd.f32 %v473, %v634
      %v667 = vadd.f32 %v474, %v635
      %v668 = vadd.f32 %v475, %v636
      %v669 = vadd.f32 %v476, %v637
      %v670 = vadd.f32 %v477, %v638
      %v671 = vadd.f32 %v478, %v639
      %v672 = vadd.f32 %v479, %v640
      %v673 = vadd.f32 %v480, %v641
      %v674 = vadd.f32 %v481, %v642
      %v675 = vadd.f32 %v482, %v643
      %v676 = vadd.f32 %v483, %v644
      %v677 = vadd.f32 %v484, %v645
      %v678 = vadd.f32 %v485, %v646
      %v679 = vadd.f32 %v486, %v647
      %v680 = vadd.f32 %v487, %v648
      %v681 = vadd.f32 %v488, %v649
      %v682 = vadd.f32 %v489, %v650
      %v683 = vadd.f32 %v490, %v651
      %v684 = vld [vmem:[%s253] sm:$0x1]
      %v686 = vperm.slane %v684, 0
      %v688 = vadd.f32 %v652, %v686
      %v689 = vadd.f32 %v653, %v686
      %v690 = vadd.f32 %v654, %v686
      %v691 = vadd.f32 %v655, %v686
      %v692 = vadd.f32 %v656, %v686
      %v693 = vadd.f32 %v657, %v686
      %v694 = vadd.f32 %v658, %v686
      %v695 = vadd.f32 %v659, %v686
      %v696 = vadd.f32 %v660, %v686
      %v697 = vadd.f32 %v661, %v686
      %v698 = vadd.f32 %v662, %v686
      %v699 = vadd.f32 %v663, %v686
      %v700 = vadd.f32 %v664, %v686
      %v701 = vadd.f32 %v665, %v686
      %v702 = vadd.f32 %v666, %v686
      %v703 = vadd.f32 %v667, %v686
      %v704 = vadd.f32 %v668, %v686
      %v705 = vadd.f32 %v669, %v686
      %v706 = vadd.f32 %v670, %v686
      %v707 = vadd.f32 %v671, %v686
      %v708 = vadd.f32 %v672, %v686
      %v709 = vadd.f32 %v673, %v686
      %v710 = vadd.f32 %v674, %v686
      %v711 = vadd.f32 %v675, %v686
      %v712 = vadd.f32 %v676, %v686
      %v713 = vadd.f32 %v677, %v686
      %v714 = vadd.f32 %v678, %v686
      %v715 = vadd.f32 %v679, %v686
      %v716 = vadd.f32 %v680, %v686
      %v717 = vadd.f32 %v681, %v686
      %v718 = vadd.f32 %v682, %v686
      %v719 = vadd.f32 %v683, %v686
      %v720 = vmax.f32 %v688, 0.0
      %v721 = vmax.f32 %v689, 0.0
      %v722 = vmax.f32 %v690, 0.0
      %v723 = vmax.f32 %v691, 0.0
      %v724 = vmax.f32 %v692, 0.0
      %v725 = vmax.f32 %v693, 0.0
      %v726 = vmax.f32 %v694, 0.0
      %v727 = vmax.f32 %v695, 0.0
      %v728 = vmax.f32 %v696, 0.0
      %v729 = vmax.f32 %v697, 0.0
      %v730 = vmax.f32 %v698, 0.0
      %v731 = vmax.f32 %v699, 0.0
      %v732 = vmax.f32 %v700, 0.0
      %v733 = vmax.f32 %v701, 0.0
      %v734 = vmax.f32 %v702, 0.0
      %v735 = vmax.f32 %v703, 0.0
      %v736 = vmax.f32 %v704, 0.0
      %v737 = vmax.f32 %v705, 0.0
      %v738 = vmax.f32 %v706, 0.0
      %v739 = vmax.f32 %v707, 0.0
      %v740 = vmax.f32 %v708, 0.0
      %v741 = vmax.f32 %v709, 0.0
      %v742 = vmax.f32 %v710, 0.0
      %v743 = vmax.f32 %v711, 0.0
      %v744 = vmax.f32 %v712, 0.0
      %v745 = vmax.f32 %v713, 0.0
      %v746 = vmax.f32 %v714, 0.0
      %v747 = vmax.f32 %v715, 0.0
      %v748 = vmax.f32 %v716, 0.0
      %v749 = vmax.f32 %v717, 0.0
      %v750 = vmax.f32 %v718, 0.0
      %v751 = vmax.f32 %v719, 0.0
      %v752 = vpack.c.bf16 %v721, %v720
      %v753 = vpack.c.bf16 %v723, %v722
      %v754 = vpack.c.bf16 %v725, %v724
      %v755 = vpack.c.bf16 %v727, %v726
      %v756 = vpack.c.bf16 %v729, %v728
      %v757 = vpack.c.bf16 %v731, %v730
      %v758 = vpack.c.bf16 %v733, %v732
      %v759 = vpack.c.bf16 %v735, %v734
      %v760 = vpack.c.bf16 %v737, %v736
      %v761 = vpack.c.bf16 %v739, %v738
      %v762 = vpack.c.bf16 %v741, %v740
      %v763 = vpack.c.bf16 %v743, %v742
      %v764 = vpack.c.bf16 %v745, %v744
      %v765 = vpack.c.bf16 %v747, %v746
      %v766 = vpack.c.bf16 %v749, %v748
      %v767 = vpack.c.bf16 %v751, %v750
      %v768 = vld [vmem:[%s3] sm:$0xf]
      %v769 = vld [vmem:[%s3 + $0x4] sm:$0xf]
      %v770 = vld [vmem:[%s3 + $0x8] sm:$0xf]
      %v771 = vld [vmem:[%s3 + $0xc] sm:$0xf]
      %v772 = vld [vmem:[%s4] sm:$0x1]
      %v774 = vperm.slane %v772, 0
      %v780 = vunpack.c.l.b16 %v768
      %v781 = vunpack.c.l.b16 %v769
      %v782 = vunpack.c.l.b16 %v770
      %v783 = vunpack.c.l.b16 %v771
      %v784 = vpack.c.b16 %v781, %v780
      %v785 = vpack.c.b16 %v783, %v782
      %vm788 = vcmask 261120
      %v790 = vsel %vm788, %v752, 0
      %v793 = vsel %vm788, %v753, 0
      %v796 = vsel %vm788, %v754, 0
      %v799 = vsel %vm788, %v755, 0
      %v802 = vsel %vm788, %v756, 0
      %v805 = vsel %vm788, %v757, 0
      %v808 = vsel %vm788, %v758, 0
      %v811 = vsel %vm788, %v759, 0
      %v814 = vsel %vm788, %v760, 0
      %v817 = vsel %vm788, %v761, 0
      %v820 = vsel %vm788, %v762, 0
      %v823 = vsel %vm788, %v763, 0
      %v826 = vsel %vm788, %v764, 0
      %v829 = vsel %vm788, %v765, 0
      %v832 = vsel %vm788, %v766, 0
      %v835 = vsel %vm788, %v767, 0
      %837 = vmatpush.bf16.msra.mxu0 0
      %838 = vmatpush.bf16.msra.mxu0 0
      %839 = vmatpush.bf16.msra.mxu0 0
      %840 = vmatpush.bf16.msra.mxu0 0
      %841 = vmatpush.bf16.msra.mxu0 0
      %842 = vmatpush.bf16.msra.mxu0 0
      %843 = vmatpush.bf16.msra.mxu0 %v785
      %844 = vmatpush.bf16.msra.mxu0 %v784
      %845 = vmatmul.bf16.gmra.mxu0 %v790
      %v846 = vpop.f32.mrf.mxu0
      %v847 = vadd.f32 %v774, %v846
      %v848 = vpop.f32.mrf.mxu0
      %v849 = vadd.f32 %v774, %v848
      %850 = vmatmul.bf16.gmra.mxu0 %v793
      %v851 = vpop.f32.mrf.mxu0
      %v852 = vadd.f32 %v774, %v851
      %v853 = vpop.f32.mrf.mxu0
      %v854 = vadd.f32 %v774, %v853
      %855 = vmatmul.bf16.gmra.mxu0 %v796
      %v856 = vpop.f32.mrf.mxu0
      %v857 = vadd.f32 %v774, %v856
      %v858 = vpop.f32.mrf.mxu0
      %v859 = vadd.f32 %v774, %v858
      %860 = vmatmul.bf16.gmra.mxu0 %v799
      %v861 = vpop.f32.mrf.mxu0
      %v862 = vadd.f32 %v774, %v861
      %v863 = vpop.f32.mrf.mxu0
      %v864 = vadd.f32 %v774, %v863
      %865 = vmatmul.bf16.gmra.mxu0 %v802
      %v866 = vpop.f32.mrf.mxu0
      %v867 = vadd.f32 %v774, %v866
      %v868 = vpop.f32.mrf.mxu0
      %v869 = vadd.f32 %v774, %v868
      %870 = vmatmul.bf16.gmra.mxu0 %v805
      %v871 = vpop.f32.mrf.mxu0
      %v872 = vadd.f32 %v774, %v871
      %v873 = vpop.f32.mrf.mxu0
      %v874 = vadd.f32 %v774, %v873
      %875 = vmatmul.bf16.gmra.mxu0 %v808
      %v876 = vpop.f32.mrf.mxu0
      %v877 = vadd.f32 %v774, %v876
      %v878 = vpop.f32.mrf.mxu0
      %v879 = vadd.f32 %v774, %v878
      %880 = vmatmul.bf16.gmra.mxu0 %v811
      %v881 = vpop.f32.mrf.mxu0
      %v882 = vadd.f32 %v774, %v881
      %v883 = vpop.f32.mrf.mxu0
      %v884 = vadd.f32 %v774, %v883
      %885 = vmatmul.bf16.gmra.mxu0 %v814
      %v886 = vpop.f32.mrf.mxu0
      %v887 = vadd.f32 %v774, %v886
      %v888 = vpop.f32.mrf.mxu0
      %v889 = vadd.f32 %v774, %v888
      %890 = vmatmul.bf16.gmra.mxu0 %v817
      %v891 = vpop.f32.mrf.mxu0
      %v892 = vadd.f32 %v774, %v891
      %v893 = vpop.f32.mrf.mxu0
      %v894 = vadd.f32 %v774, %v893
      %895 = vmatmul.bf16.gmra.mxu0 %v820
      %v896 = vpop.f32.mrf.mxu0
      %v897 = vadd.f32 %v774, %v896
      %v898 = vpop.f32.mrf.mxu0
      %v899 = vadd.f32 %v774, %v898
      %900 = vmatmul.bf16.gmra.mxu0 %v823
      %v901 = vpop.f32.mrf.mxu0
      %v902 = vadd.f32 %v774, %v901
      %v903 = vpop.f32.mrf.mxu0
      %v904 = vadd.f32 %v774, %v903
      %905 = vmatmul.bf16.gmra.mxu0 %v826
      %v906 = vpop.f32.mrf.mxu0
      %v907 = vadd.f32 %v774, %v906
      %v908 = vpop.f32.mrf.mxu0
      %v909 = vadd.f32 %v774, %v908
      %910 = vmatmul.bf16.gmra.mxu0 %v829
      %v911 = vpop.f32.mrf.mxu0
      %v912 = vadd.f32 %v774, %v911
      %v913 = vpop.f32.mrf.mxu0
      %v914 = vadd.f32 %v774, %v913
      %915 = vmatmul.bf16.gmra.mxu0 %v832
      %v916 = vpop.f32.mrf.mxu0
      %v917 = vadd.f32 %v774, %v916
      %v918 = vpop.f32.mrf.mxu0
      %v919 = vadd.f32 %v774, %v918
      %920 = vmatmul.bf16.gmra.mxu0 %v835
      %v921 = vpop.f32.mrf.mxu0
      %v922 = vadd.f32 %v774, %v921
      %v923 = vpop.f32.mrf.mxu0
      %v924 = vadd.f32 %v774, %v923
      %925 = vdwg.mxu0
      %vm926 = vcmask 31744
      %927 = vst.msk [vmem:[%s262] sm:$0xff] %vm926, %v847
      %928 = vst.msk [vmem:[%s262 + $0x8] sm:$0xff] %vm926, %v849
      %929 = vst.msk [vmem:[%s262 + $0x10] sm:$0xff] %vm926, %v852
      %930 = vst.msk [vmem:[%s262 + $0x18] sm:$0xff] %vm926, %v854
      %931 = vst.msk [vmem:[%s262 + $0x20] sm:$0xff] %vm926, %v857
      %932 = vst.msk [vmem:[%s262 + $0x28] sm:$0xff] %vm926, %v859
      %933 = vst.msk [vmem:[%s262 + $0x30] sm:$0xff] %vm926, %v862
      %934 = vst.msk [vmem:[%s262 + $0x38] sm:$0xff] %vm926, %v864
      %935 = vst.msk [vmem:[%s262 + $0x40] sm:$0xff] %vm926, %v867
      %936 = vst.msk [vmem:[%s262 + $0x48] sm:$0xff] %vm926, %v869
      %937 = vst.msk [vmem:[%s262 + $0x50] sm:$0xff] %vm926, %v872
      %938 = vst.msk [vmem:[%s262 + $0x58] sm:$0xff] %vm926, %v874
      %939 = vst.msk [vmem:[%s262 + $0x60] sm:$0xff] %vm926, %v877
      %940 = vst.msk [vmem:[%s262 + $0x68] sm:$0xff] %vm926, %v879
      %941 = vst.msk [vmem:[%s262 + $0x70] sm:$0xff] %vm926, %v882
      %942 = vst.msk [vmem:[%s262 + $0x78] sm:$0xff] %vm926, %v884
      %943 = vst.msk [vmem:[%s262 + $0x80] sm:$0xff] %vm926, %v887
      %944 = vst.msk [vmem:[%s262 + $0x88] sm:$0xff] %vm926, %v889
      %945 = vst.msk [vmem:[%s262 + $0x90] sm:$0xff] %vm926, %v892
      %946 = vst.msk [vmem:[%s262 + $0x98] sm:$0xff] %vm926, %v894
      %947 = vst.msk [vmem:[%s262 + $0xa0] sm:$0xff] %vm926, %v897
      %948 = vst.msk [vmem:[%s262 + $0xa8] sm:$0xff] %vm926, %v899
      %949 = vst.msk [vmem:[%s262 + $0xb0] sm:$0xff] %vm926, %v902
      %950 = vst.msk [vmem:[%s262 + $0xb8] sm:$0xff] %vm926, %v904
      %951 = vst.msk [vmem:[%s262 + $0xc0] sm:$0xff] %vm926, %v907
      %952 = vst.msk [vmem:[%s262 + $0xc8] sm:$0xff] %vm926, %v909
      %953 = vst.msk [vmem:[%s262 + $0xd0] sm:$0xff] %vm926, %v912
      %954 = vst.msk [vmem:[%s262 + $0xd8] sm:$0xff] %vm926, %v914
      %955 = vst.msk [vmem:[%s262 + $0xe0] sm:$0xff] %vm926, %v917
      %956 = vst.msk [vmem:[%s262 + $0xe8] sm:$0xff] %vm926, %v919
      %957 = vst.msk [vmem:[%s262 + $0xf0] sm:$0xff] %vm926, %v922
      %958 = vst.msk [vmem:[%s262 + $0xf8] sm:$0xff] %vm926, %v924
      %s959 = smul.u32 32, %s21
      %p960 = scmp.lt.s32.totalorder %s20, 1
      %s961 = scalar_select %p960, %s20, 1
      %p962 = scmp.lt.s32.totalorder %s959, 31
      %s963 = scalar_select %p962, %s959, 31
      %s964 = smul.addr %s961, 32
      %s965 = sadd.s32 %s963, %s964
      %s966 = smul.addr %s965, 8
      %s967 = scalar_lea.vmem %s5, %s966
      // Predicated region
      $region41: #{_rasterize.1} parent=39 // pred_check
        %p968 = pneg %p163
      $region42: #{_rasterize.1} parent=39 // pred_check_branch
        %970 = sbr.rel (%p968) target = $region44
      $region43: #{_rasterize.1} parent=39 // pred_region
        %s971 = smul.u32 32, %s21
      $region44: #{_rasterize.1} parent=39 // pred_fallthru
        _
    $region40: #{_rasterize.1} parent=5 // pred_fallthru
      _
    %p972 = scmp.le.s32.totalorder 2, %s11
    // Predicated region
    $region45: #{_rasterize.1} parent=5 // pred_check
      %p973 = pneg %p972
    $region46: #{_rasterize.1} parent=5 // pred_check_branch
      %975 = sbr.rel (%p973) target = $region48
    $region47: #{_rasterize.1} parent=5 // pred_region
      %s976 = ssub.s32 %s11, 2
      // Predicated region
      $region49: #{_rasterize.1} parent=47 // pred_check
        %p977 = pneg %p169
      $region50: #{_rasterize.1} parent=47 // pred_check_branch
        %979 = sbr.rel (%p977) target = $region52
      $region51: #{_rasterize.1} parent=47 // pred_region
        %s980 = smul.u32 32, %s23
        %p981 = scmp.lt.s32.totalorder %s22, 1
        %s982 = scalar_select %p981, %s22, 1
        %p983 = scmp.lt.s32.totalorder %s980, 31
        %s984 = scalar_select %p983, %s980, 31
        %s985 = smul.addr %s982, 32
        %s986 = sadd.s32 %s984, %s985
        %s987 = smul.addr %s986, 8
        %s988 = scalar_lea.vmem %s5, %s987
      $region52: #{_rasterize.1} parent=47 // pred_fallthru
        _
    $region48: #{_rasterize.1} parent=5 // pred_fallthru
      _
  $region6: #{_rasterize.1} parent=0 // loop_footer
    %s15 = sadd.s32 1, %s11
  $region7: #{_rasterize.1} parent=0 // loop_footer_branch
    %10 = sbr.rel target = $region3
  $region8: #{_rasterize.1} parent=0 // loop_exit
    _

</llo_original>
